<compile_context>
chip_gen: v7x
topology: tpu7x:2x2x1
jax: 0.10.0
libtpu: 0.0.40
codegen_flags: <defaults>
</compile_context>

<pallas_src>
import jax
import jax.numpy as jnp
from jax.experimental import pallas as pl
from jax.experimental.pallas import tpu as pltpu

VOCAB = {'<pad>': 0, '<unk>': 1, '<cls>': 2, 'good': 3, 'bad': 4,
         'great': 5, 'terrible': 6, ':happy:': 7, ':sad:': 8}
VOCAB_SIZE = len(VOCAB)          # 9
MAX_SEQ_LENGTH = 128


def _round_up(a, b):
    return pl.cdiv(a, b) * b


def _embeddings_kernel(ids_ref, tok_ref, pos_ref, out_ref):
    # ids_ref: (1, Tp, P)   int32 -- P lane-packed token ids per physical row
    # tok_ref: (V, P*D)     f32   -- vocab table, each row tiled P times along lanes
    # pos_ref: (Tp, P*D)    f32   -- lane-packed positional rows for this seq tile
    # out_ref: (1, Tp, P*D) f32
    tile_phys, pd = pos_ref.shape
    v_size = tok_ref.shape[0]
    p = ids_ref.shape[2]
    d = pd // p

    # Static sub-chunk size (multiple of 8, divides tile_phys) so the
    # elementwise chain's intermediates stay small instead of full-tile temps.
    chunk = tile_phys
    for c in (256, 128, 64, 32, 16, 8):
        if tile_phys % c == 0:
            chunk = c
            break
    n_chunks = tile_phys // chunk

    # Constant per-chunk lane-group masks, hoisted out of the row loop.
    lane = jax.lax.broadcasted_iota(jnp.int32, (chunk, pd), 1)
    group_masks = [lane >= g * d for g in range(1, p)]

    def body(i, carry):
        start = pl.multiple_of(i * chunk, chunk)
        ids_c = ids_ref[0, pl.ds(start, chunk), :]                 # (chunk, P) int32

        # Expand each id across its D-wide lane group via monotone overwrite:
        # group 0 seeds ids_x; groups 1..P-1 cost one select each.
        ids_x = jnp.broadcast_to(ids_c[:, 0:1], (chunk, pd))
        for g in range(1, p):
            ids_x = jnp.where(group_masks[g - 1],
                              jnp.broadcast_to(ids_c[:, g:g + 1], (chunk, pd)),
                              ids_x)

        # Token-embedding gather as a (V-1)-way compare+select (pure VPU,
        # bit-exact).  v = 0 is folded into the accumulator init.
        acc = jnp.broadcast_to(tok_ref[0:1, :], (chunk, pd))
        for v in range(1, v_size):
            acc = jnp.where(ids_x == v,
                            jnp.broadcast_to(tok_ref[v:v + 1, :], (chunk, pd)),
                            acc)

        out_ref[0, pl.ds(start, chunk), :] = acc + pos_ref[pl.ds(start, chunk), :]
        return carry

    jax.lax.fori_loop(0, n_chunks, body, 0, unroll=bool(n_chunks <= 8))
    # TODO(synk): nn.Dropout(0.1) is identity in eval mode; training-mode dropout
    # (pltpu.prng_seed / prng_random_bits masking + 1/(1-p) scaling) not implemented.


def embeddings_forward(x, token_emb, pos_emb, *, target_phys_rows=4096):
    """x: (B, S) int32 token ids. Returns dropout-eval(token_emb[x] + pos_emb[:S])."""
    B, S = x.shape
    V, D = token_emb.shape
    L = pos_emb.shape[0]
    assert S <= L, "sequence length exceeds positional table"

    # Lane packing factor: D=32 -> P=4, P*D=128 lanes (dense stores).
    P = 128 // D if (D < 128 and 128 % D == 0) else 1
    PD = P * D

    # Physical-row count, rounded to a multiple of 8 (avoid sublane-masked stores).
    S_phys = pl.cdiv(S, P)
    S_phys8 = _round_up(S_phys, 8)

    # Tile sizing: as big as fits the target (amortize per-step overhead), but
    # when B == 1 keep >= 2 seq tiles so v7x's second TensorCore has work.
    tile_phys = min(target_phys_rows, S_phys8)
    if B == 1 and S_phys8 >= 16:
        tile_phys = min(tile_phys, _round_up(pl.cdiv(S_phys8, 2), 8))
    tile_phys = _round_up(tile_phys, 8)
    s_phys_pad = _round_up(S_phys8, tile_phys)
    S_pad = s_phys_pad * P

    # Token ids: (B, S) -> lane-packed (B, s_phys_pad, P); pad with <pad>=0.
    ids = jnp.pad(x.astype(jnp.int32), ((0, 0), (0, S_pad - S)))
    ids = ids.reshape(B, s_phys_pad, P)

    # Positional table viewed lane-packed: (L, D) -> (L/P, P*D) is a free reshape
    # of contiguous rows.  No (B*S, D) positional tile is ever materialized.
    L_pad = _round_up(L, P)
    pos_p = pos_emb if L_pad == L else jnp.pad(pos_emb, ((0, L_pad - L), (0, 0)))
    pos_packed = pos_p.reshape(L_pad // P, PD)
    if s_phys_pad <= L_pad // P:
        pos_packed = pos_packed[:s_phys_pad]
    else:
        pos_packed = jnp.pad(pos_packed, ((0, s_phys_pad - L_pad // P), (0, 0)))

    # Vocab table lane-packed: each row repeated P times (tiny: V * 128 floats).
    tok_packed = jnp.tile(token_emb, (1, P))

    # Grid: (seq-tiles, B) with B innermost -> pos tile stays resident across
    # the batch axis (single HBM pass over the positional rows).
    grid = (s_phys_pad // tile_phys, B)
    out = pl.pallas_call(
        _embeddings_kernel,
        out_shape=jax.ShapeDtypeStruct((B, s_phys_pad, PD), jnp.float32),
        grid_spec=pltpu.PrefetchScalarGridSpec(
            num_scalar_prefetch=0,
            grid=grid,
            in_specs=[
                pl.BlockSpec((1, tile_phys, P), lambda s, b: (b, s, 0)),   # ids
                pl.BlockSpec((V, PD), lambda s, b: (0, 0)),                # vocab table
                pl.BlockSpec((tile_phys, PD), lambda s, b: (s, 0)),        # pos rows
            ],
            out_specs=pl.BlockSpec((1, tile_phys, PD), lambda s, b: (b, s, 0)),
        ),
        compiler_params=pltpu.CompilerParams(
            dimension_semantics=("parallel", "parallel"),   # megacore shards both axes
            vmem_limit_bytes=32 * 1024 * 1024,              # safe on v5e/v6e/v7x
        ),
    )(ids, tok_packed, pos_packed)

    # Unpack lanes back to (B, S, D) -- same contiguous bytes -- and trim padding.
    return out.reshape(B, S_pad, D)[:, :S, :]


if __name__ == "__main__":
    key = jax.random.PRNGKey(0)
    k_tok, k_pos, k_x = jax.random.split(key, 3)

    d_model = 32
    batch, seq = 2, 8

    # nn.Embedding default init: weights ~ N(0, 1)
    token_emb = jax.random.normal(k_tok, (VOCAB_SIZE, d_model), jnp.float32)
    pos_emb = jax.random.normal(k_pos, (MAX_SEQ_LENGTH, d_model), jnp.float32)

    x = jax.random.randint(k_x, (batch, seq), 0, VOCAB_SIZE, dtype=jnp.int32)

    out = jax.block_until_ready(embeddings_forward(x, token_emb, pos_emb))

    # Pure-JAX reference (dropout in eval mode is identity).
    ref = token_emb[x] + pos_emb[:seq][None, :, :]
    assert out.shape == (batch, seq, d_model)
    assert jnp.allclose(out, ref, atol=1e-5), "mismatch vs reference"
    print("KERNEL_OK")
</pallas_src>

<mosaic_0001>
module attributes {stable_mosaic.version = 11 : i64} {
  func.func @_embeddings_kernel(%arg0: i32, %arg1: i32, %arg2: memref<1x8x4xi32, #tpu.memory_space<vmem>>, %arg3: memref<9x128xf32, #tpu.memory_space<vmem>>, %arg4: memref<8x128xf32, #tpu.memory_space<vmem>>, %arg5: memref<1x8x128xf32, #tpu.memory_space<vmem>>) attributes {dimension_semantics = [#tpu.dimension_semantics<parallel>, #tpu.dimension_semantics<parallel>], iteration_bounds = array<i64: 1, 2>, scalar_prefetch = 0 : i64, scratch_operands = 0 : i64, tpu.core_type = #tpu.core_type<tc>, window_params = [{transform_indices = @transform_0, window_bounds = array<i64: 1, 8, 4>}, {pipeline_mode = #tpu.pipeline_mode<synchronous>, transform_indices = @transform_1, window_bounds = array<i64: 9, 128>}, {transform_indices = @transform_2, window_bounds = array<i64: 8, 128>}, {transform_indices = @transform_3, window_bounds = array<i64: 1, 8, 128>}]} {
    %0 = tpu.iota {dimensions = array<i32: 1>} : vector<8x128xi32>
    %c32_i32 = arith.constant 32 : i32
    %1 = vector.broadcast %c32_i32 : i32 to vector<8x128xi32>
    %2 = arith.cmpi sge, %0, %1 : vector<8x128xi32>
    %c64_i32 = arith.constant 64 : i32
    %3 = vector.broadcast %c64_i32 : i32 to vector<8x128xi32>
    %4 = arith.cmpi sge, %0, %3 : vector<8x128xi32>
    %c96_i32 = arith.constant 96 : i32
    %5 = vector.broadcast %c96_i32 : i32 to vector<8x128xi32>
    %6 = arith.cmpi sge, %0, %5 : vector<8x128xi32>
    %c0_i32 = arith.constant 0 : i32
    %c8_i32 = arith.constant 8 : i32
    %7 = arith.muli %c0_i32, %c8_i32 : i32
    %8 = tpu.assume_multiple %7, 8 : i32
    %c0 = arith.constant 0 : index
    %9 = arith.index_cast %8 : i32 to index
    %c0_0 = arith.constant 0 : index
    %10 = vector.load %arg2[%c0, %9, %c0_0] : memref<1x8x4xi32, #tpu.memory_space<vmem>>, vector<1x8x4xi32>
    %11 = vector.shape_cast %10 : vector<1x8x4xi32> to vector<8x4xi32>
    %12 = vector.extract_strided_slice %11 {offsets = [0, 0], sizes = [8, 1], strides = [1, 1]} : vector<8x4xi32> to vector<8x1xi32>
    %13 = vector.shape_cast %12 : vector<8x1xi32> to vector<8x1xi32>
    %14 = vector.broadcast %13 : vector<8x1xi32> to vector<8x128xi32>
    %15 = vector.extract_strided_slice %11 {offsets = [0, 1], sizes = [8, 1], strides = [1, 1]} : vector<8x4xi32> to vector<8x1xi32>
    %16 = vector.shape_cast %15 : vector<8x1xi32> to vector<8x1xi32>
    %17 = vector.broadcast %16 : vector<8x1xi32> to vector<8x128xi32>
    %18 = arith.select %2, %17, %14 : vector<8x128xi1>, vector<8x128xi32>
    %19 = vector.extract_strided_slice %11 {offsets = [0, 2], sizes = [8, 1], strides = [1, 1]} : vector<8x4xi32> to vector<8x1xi32>
    %20 = vector.shape_cast %19 : vector<8x1xi32> to vector<8x1xi32>
    %21 = vector.broadcast %20 : vector<8x1xi32> to vector<8x128xi32>
    %22 = arith.select %4, %21, %18 : vector<8x128xi1>, vector<8x128xi32>
    %23 = vector.extract_strided_slice %11 {offsets = [0, 3], sizes = [8, 1], strides = [1, 1]} : vector<8x4xi32> to vector<8x1xi32>
    %24 = vector.shape_cast %23 : vector<8x1xi32> to vector<8x1xi32>
    %25 = vector.broadcast %24 : vector<8x1xi32> to vector<8x128xi32>
    %26 = arith.select %6, %25, %22 : vector<8x128xi1>, vector<8x128xi32>
    %c0_1 = arith.constant 0 : index
    %c0_2 = arith.constant 0 : index
    %27 = vector.load %arg3[%c0_1, %c0_2] : memref<9x128xf32, #tpu.memory_space<vmem>>, vector<1x128xf32>
    %28 = vector.shape_cast %27 : vector<1x128xf32> to vector<1x128xf32>
    %29 = vector.broadcast %28 : vector<1x128xf32> to vector<8x128xf32>
    %c1_i32 = arith.constant 1 : i32
    %30 = vector.broadcast %c1_i32 : i32 to vector<8x128xi32>
    %31 = arith.cmpi eq, %26, %30 : vector<8x128xi32>
    %c1 = arith.constant 1 : index
    %c0_3 = arith.constant 0 : index
    %32 = vector.load %arg3[%c1, %c0_3] : memref<9x128xf32, #tpu.memory_space<vmem>>, vector<1x128xf32>
    %33 = vector.shape_cast %32 : vector<1x128xf32> to vector<1x128xf32>
    %34 = vector.broadcast %33 : vector<1x128xf32> to vector<8x128xf32>
    %35 = arith.select %31, %34, %29 : vector<8x128xi1>, vector<8x128xf32>
    %c2_i32 = arith.constant 2 : i32
    %36 = vector.broadcast %c2_i32 : i32 to vector<8x128xi32>
    %37 = arith.cmpi eq, %26, %36 : vector<8x128xi32>
    %c2 = arith.constant 2 : index
    %c0_4 = arith.constant 0 : index
    %38 = vector.load %arg3[%c2, %c0_4] : memref<9x128xf32, #tpu.memory_space<vmem>>, vector<1x128xf32>
    %39 = vector.shape_cast %38 : vector<1x128xf32> to vector<1x128xf32>
    %40 = vector.broadcast %39 : vector<1x128xf32> to vector<8x128xf32>
    %41 = arith.select %37, %40, %35 : vector<8x128xi1>, vector<8x128xf32>
    %c3_i32 = arith.constant 3 : i32
    %42 = vector.broadcast %c3_i32 : i32 to vector<8x128xi32>
    %43 = arith.cmpi eq, %26, %42 : vector<8x128xi32>
    %c3 = arith.constant 3 : index
    %c0_5 = arith.constant 0 : index
    %44 = vector.load %arg3[%c3, %c0_5] : memref<9x128xf32, #tpu.memory_space<vmem>>, vector<1x128xf32>
    %45 = vector.shape_cast %44 : vector<1x128xf32> to vector<1x128xf32>
    %46 = vector.broadcast %45 : vector<1x128xf32> to vector<8x128xf32>
    %47 = arith.select %43, %46, %41 : vector<8x128xi1>, vector<8x128xf32>
    %c4_i32 = arith.constant 4 : i32
    %48 = vector.broadcast %c4_i32 : i32 to vector<8x128xi32>
    %49 = arith.cmpi eq, %26, %48 : vector<8x128xi32>
    %c4 = arith.constant 4 : index
    %c0_6 = arith.constant 0 : index
    %50 = vector.load %arg3[%c4, %c0_6] : memref<9x128xf32, #tpu.memory_space<vmem>>, vector<1x128xf32>
    %51 = vector.shape_cast %50 : vector<1x128xf32> to vector<1x128xf32>
    %52 = vector.broadcast %51 : vector<1x128xf32> to vector<8x128xf32>
    %53 = arith.select %49, %52, %47 : vector<8x128xi1>, vector<8x128xf32>
    %c5_i32 = arith.constant 5 : i32
    %54 = vector.broadcast %c5_i32 : i32 to vector<8x128xi32>
    %55 = arith.cmpi eq, %26, %54 : vector<8x128xi32>
    %c5 = arith.constant 5 : index
    %c0_7 = arith.constant 0 : index
    %56 = vector.load %arg3[%c5, %c0_7] : memref<9x128xf32, #tpu.memory_space<vmem>>, vector<1x128xf32>
    %57 = vector.shape_cast %56 : vector<1x128xf32> to vector<1x128xf32>
    %58 = vector.broadcast %57 : vector<1x128xf32> to vector<8x128xf32>
    %59 = arith.select %55, %58, %53 : vector<8x128xi1>, vector<8x128xf32>
    %c6_i32 = arith.constant 6 : i32
    %60 = vector.broadcast %c6_i32 : i32 to vector<8x128xi32>
    %61 = arith.cmpi eq, %26, %60 : vector<8x128xi32>
    %c6 = arith.constant 6 : index
    %c0_8 = arith.constant 0 : index
    %62 = vector.load %arg3[%c6, %c0_8] : memref<9x128xf32, #tpu.memory_space<vmem>>, vector<1x128xf32>
    %63 = vector.shape_cast %62 : vector<1x128xf32> to vector<1x128xf32>
    %64 = vector.broadcast %63 : vector<1x128xf32> to vector<8x128xf32>
    %65 = arith.select %61, %64, %59 : vector<8x128xi1>, vector<8x128xf32>
    %c7_i32 = arith.constant 7 : i32
    %66 = vector.broadcast %c7_i32 : i32 to vector<8x128xi32>
    %67 = arith.cmpi eq, %26, %66 : vector<8x128xi32>
    %c7 = arith.constant 7 : index
    %c0_9 = arith.constant 0 : index
    %68 = vector.load %arg3[%c7, %c0_9] : memref<9x128xf32, #tpu.memory_space<vmem>>, vector<1x128xf32>
    %69 = vector.shape_cast %68 : vector<1x128xf32> to vector<1x128xf32>
    %70 = vector.broadcast %69 : vector<1x128xf32> to vector<8x128xf32>
    %71 = arith.select %67, %70, %65 : vector<8x128xi1>, vector<8x128xf32>
    %c8_i32_10 = arith.constant 8 : i32
    %72 = vector.broadcast %c8_i32_10 : i32 to vector<8x128xi32>
    %73 = arith.cmpi eq, %26, %72 : vector<8x128xi32>
    %c8 = arith.constant 8 : index
    %c0_11 = arith.constant 0 : index
    %74 = vector.load %arg3[%c8, %c0_11] : memref<9x128xf32, #tpu.memory_space<vmem>>, vector<1x128xf32>
    %75 = vector.shape_cast %74 : vector<1x128xf32> to vector<1x128xf32>
    %76 = vector.broadcast %75 : vector<1x128xf32> to vector<8x128xf32>
    %77 = arith.select %73, %76, %71 : vector<8x128xi1>, vector<8x128xf32>
    %78 = arith.index_cast %8 : i32 to index
    %c0_12 = arith.constant 0 : index
    %79 = vector.load %arg4[%78, %c0_12] : memref<8x128xf32, #tpu.memory_space<vmem>>, vector<8x128xf32>
    %80 = arith.addf %77, %79 : vector<8x128xf32>
    %c0_13 = arith.constant 0 : index
    %81 = arith.index_cast %8 : i32 to index
    %c0_14 = arith.constant 0 : index
    %82 = vector.load %arg5[%c0_13, %81, %c0_14] : memref<1x8x128xf32, #tpu.memory_space<vmem>>, vector<1x8x128xf32>
    %83 = vector.shape_cast %82 : vector<1x8x128xf32> to vector<8x128xf32>
    %84 = vector.shape_cast %80 : vector<8x128xf32> to vector<1x8x128xf32>
    tpu.vector_store %arg5[%c0_13, %81, %c0_14], %84 {strides = array<i32>} : memref<1x8x128xf32, #tpu.memory_space<vmem>>, vector<1x8x128xf32>,
    %c1_i32_15 = arith.constant 1 : i32
    return
  }
  func.func @transform_0(%arg0: i32, %arg1: i32) -> (i32, i32, i32) {
    %c0_i32 = arith.constant 0 : i32
    %c0_i32_0 = arith.constant 0 : i32
    return %arg1, %arg0, %c0_i32 : i32, i32, i32
  }
  func.func @transform_1(%arg0: i32, %arg1: i32) -> (i32, i32) {
    %c0_i32 = arith.constant 0 : i32
    %c0_i32_0 = arith.constant 0 : i32
    %c0_i32_1 = arith.constant 0 : i32
    return %c0_i32, %c0_i32_0 : i32, i32
  }
  func.func @transform_2(%arg0: i32, %arg1: i32) -> (i32, i32) {
    %c0_i32 = arith.constant 0 : i32
    %c0_i32_0 = arith.constant 0 : i32
    return %arg0, %c0_i32 : i32, i32
  }
  func.func @transform_3(%arg0: i32, %arg1: i32) -> (i32, i32, i32) {
    %c0_i32 = arith.constant 0 : i32
    %c0_i32_0 = arith.constant 0 : i32
    return %arg1, %arg0, %c0_i32 : i32, i32, i32
  }
}

</mosaic_0001>

<llo_original>
// kernel: tpu_custom_call.1
$region0: #{tpu_custom_call.1}
  #allocation0 [shape = 'u32[]', space=smem, size = 0x4, offset = 0x4, fixed_abs, tag = 'smem constant byte address 0x4 - core index']
  #allocation1 [shape = 'u32[144,128]{1,0:T(1,128)}', space=vmem, size = 0x12000, scoped, tag = 'internal scratch']
  %s0 = inlined_call_operand.vmem [shape: s32[2,8,4], index: 0, kind: input, shape index: {}]
  %s1 = inlined_call_operand.vmem [shape: f32[9,128], index: 1, kind: input, shape index: {}]
  %s2 = inlined_call_operand.vmem [shape: f32[8,128], index: 2, kind: input, shape index: {}]
  %s3 = inlined_call_operand.hbm [shape: f32[2,8,128], index: 3, kind: output, shape index: {}]
  %s4 = sld [smem:[#allocation0]]
  $region45: #{tpu_custom_call.1} parent=0
    _
  %s6 = ssub.s32 1, %s4
  %s7 = scalar_select 0, %s6, %s4
  $region1: #{tpu_custom_call.1} parent=0
    #allocation2 [shape = 'u8[8192]{0}', space=vmem, size = 0x2000, scoped, tag = 'output window, operand 0']
    #allocation3 [shape = 's32[2]{0}', space=sflag, size = 0x8, scoped, tag = 'scoped memory for tpu_custom_call.1']
    %8 = vsyncpa [#allocation3], 0
    %s9 = scalar_lea.sflag [#allocation3], 1
    %10 = vsyncpa %s9, 0
    loop: start=0, step=1, limit=4
    $region2: #{tpu_custom_call.1} parent=1 // loop_pre_header
      _
    $region3: #{tpu_custom_call.1} parent=1 // loop_header
      %s12 = sphi 0, %s16
      %p13 = scmp.ge.s32.totalorder %s12, 4
      %s19 = sphi 0, %s31
      %s20 = sphi 0, %s27
      %s21 = sphi 0, %s19
      %s22 = sphi 0, %s20
      %s23 = sphi 0, %s21
      %s24 = sphi 0, %s22
      %s36 = sphi 0, %s38
      %s39 = sphi 0, %s36
      %s40 = sphi 0, %s39
      %s56 = sphi 0, %s40
      %s60 = sphi 0, %s60
      %s62 = sphi 0, %s60
      %s63 = sphi 0, %s62
      %s77 = sphi 0, %s63
      %s83 = sphi 0, %s85
      %s86 = sphi 0, %s83
      %s87 = sphi 0, %s86
      %s103 = sphi 0, %s87
      %s111 = sphi 0, %s113
      %s114 = sphi 0, %s111
      %s115 = sphi 0, %s114
      %s131 = sphi 0, %s115
    $region4: #{tpu_custom_call.1} parent=1 // loop_header_branch
      %15 = sbr.rel (%p13) target = $region8
    $region5: #{tpu_custom_call.1} parent=1 // loop_body
      %s17 = ssub.s32 %s12, 1
      %s18 = ssub.s32 %s12, 2
      %s25 = sadd.s32 1, %s20
      %p26 = scmp.ge.s32.totalorder %s25, 2
      %s27 = scalar_select %p26, 0, %s25
      %s28 = sadd.s32 1, %s19
      %s29 = scalar_select %p26, %s28, %s19
      %p30 = scmp.ge.s32.totalorder %s29, 1
      %s31 = scalar_select %p30, 0, %s29
      %s32 = ssub.s32 %s20, %s27
      %s33 = ssub.s32 %s19, %s31
      %s34 = sor.u32 %s32, %s33
      %p35 = scmp.eq.s32.totalorder %s34, 0
      %s37 = sadd.s32 %s36, 1
      %s38 = scalar_select %p35, %s36, %s37
      %p41 = pneg %p35
      %p42 = scmp.eq.s32.totalorder %s12, 1
      %p43 = por %p41, %p42
      %p44 = scmp.ne.s32.totalorder %s36, %s39
      %p45 = scmp.eq.s32.totalorder %s12, 0
      %p46 = por %p44, %p45
      %p47 = scmp.ne.s32.totalorder %s36, %s39
      %p48 = scmp.eq.s32.totalorder %s17, 1
      %p49 = por %p47, %p48
      %p50 = scmp.ne.s32.totalorder %s39, %s40
      %p51 = scmp.eq.s32.totalorder %s17, 0
      %p52 = por %p50, %p51
      %p53 = scmp.ne.s32.totalorder %s39, %s40
      %p54 = scmp.eq.s32.totalorder %s18, 1
      %p55 = por %p53, %p54
      %p57 = scmp.ne.s32.totalorder %s40, %s56
      %p58 = scmp.eq.s32.totalorder %s18, 0
      %p59 = por %p57, %p58
      %s61 = sadd.s32 %s60, 1
      %p64 = scmp.eq.s32.totalorder %s12, 1
      %p65 = scmp.ne.s32.totalorder %s60, %s62
      %p66 = scmp.eq.s32.totalorder %s12, 0
      %p67 = por %p65, %p66
      %p68 = scmp.ne.s32.totalorder %s60, %s62
      %p69 = scmp.eq.s32.totalorder %s17, 1
      %p70 = por %p68, %p69
      %p71 = scmp.ne.s32.totalorder %s62, %s63
      %p72 = scmp.eq.s32.totalorder %s17, 0
      %p73 = por %p71, %p72
      %p74 = scmp.ne.s32.totalorder %s62, %s63
      %p75 = scmp.eq.s32.totalorder %s18, 1
      %p76 = por %p74, %p75
      %p78 = scmp.ne.s32.totalorder %s63, %s77
      %p79 = scmp.eq.s32.totalorder %s18, 0
      %p80 = por %p78, %p79
      %s81 = ssub.s32 %s19, %s31
      %p82 = scmp.eq.s32.totalorder %s81, 0
      %s84 = sadd.s32 %s83, 1
      %s85 = scalar_select %p82, %s83, %s84
      %p88 = pneg %p82
      %p89 = scmp.eq.s32.totalorder %s12, 1
      %p90 = por %p88, %p89
      %p91 = scmp.ne.s32.totalorder %s83, %s86
      %p92 = scmp.eq.s32.totalorder %s12, 0
      %p93 = por %p91, %p92
      %p94 = scmp.ne.s32.totalorder %s83, %s86
      %p95 = scmp.eq.s32.totalorder %s17, 1
      %p96 = por %p94, %p95
      %p97 = scmp.ne.s32.totalorder %s86, %s87
      %p98 = scmp.eq.s32.totalorder %s17, 0
      %p99 = por %p97, %p98
      %p100 = scmp.ne.s32.totalorder %s86, %s87
      %p101 = scmp.eq.s32.totalorder %s18, 1
      %p102 = por %p100, %p101
      %p104 = scmp.ne.s32.totalorder %s87, %s103
      %p105 = scmp.eq.s32.totalorder %s18, 0
      %p106 = por %p104, %p105
      %s107 = ssub.s32 %s20, %s27
      %s108 = ssub.s32 %s19, %s31
      %s109 = sor.u32 %s107, %s108
      %p110 = scmp.eq.s32.totalorder %s109, 0
      %s112 = sadd.s32 %s111, 1
      %s113 = scalar_select %p110, %s111, %s112
      %p116 = pneg %p110
      %p117 = scmp.eq.s32.totalorder %s12, 1
      %p118 = por %p116, %p117
      %p119 = scmp.ne.s32.totalorder %s111, %s114
      %p120 = scmp.eq.s32.totalorder %s12, 0
      %p121 = por %p119, %p120
      %p122 = scmp.ne.s32.totalorder %s111, %s114
      %p123 = scmp.eq.s32.totalorder %s17, 1
      %p124 = por %p122, %p123
      %p125 = scmp.ne.s32.totalorder %s114, %s115
      %p126 = scmp.eq.s32.totalorder %s17, 0
      %p127 = por %p125, %p126
      %p128 = scmp.ne.s32.totalorder %s114, %s115
      %p129 = scmp.eq.s32.totalorder %s18, 1
      %p130 = por %p128, %p129
      %p132 = scmp.ne.s32.totalorder %s115, %s131
      %p133 = scmp.eq.s32.totalorder %s18, 0
      %p134 = por %p132, %p133
      %p135 = scmp.le.s32.totalorder 1, %s12
      %p136 = scmp.lt.s32.totalorder %s12, 3
      %p137 = pnand %p135, %p136
      %p138 = pneg %p137
      // Predicated region
      $region9: #{tpu_custom_call.1} parent=5 // pred_check
        _
      $region10: #{tpu_custom_call.1} parent=5 // pred_check_branch
        %140 = sbr.rel (%p137) target = $region12
      $region11: #{tpu_custom_call.1} parent=5 // pred_region
        %s141 = ssub.s32 %s12, 1
        // Predicated region
        $region13: #{tpu_custom_call.1} parent=11 // pred_check
          %p142 = pneg %p73
        $region14: #{tpu_custom_call.1} parent=11 // pred_check_branch
          %144 = sbr.rel (%p142) target = $region16
        $region15: #{tpu_custom_call.1} parent=11 // pred_region
          _
        $region16: #{tpu_custom_call.1} parent=11 // pred_fallthru
          _
        // Predicated region
        $region17: #{tpu_custom_call.1} parent=11 // pred_check
          %p145 = pneg %p99
        $region18: #{tpu_custom_call.1} parent=11 // pred_check_branch
          %147 = sbr.rel (%p145) target = $region20
        $region19: #{tpu_custom_call.1} parent=11 // pred_region
          %p148 = scmp.lt.s32.totalorder %s21, 0
          %s149 = scalar_select %p148, %s21, 0
          %s150 = smul.addr %s149, 8
          %s151 = scalar_lea.vmem %s2, %s150
        $region20: #{tpu_custom_call.1} parent=11 // pred_fallthru
          _
      $region12: #{tpu_custom_call.1} parent=5 // pred_fallthru
        _
      %p152 = scmp.lt.s32.totalorder %s12, 2
      // Predicated region
      $region21: #{tpu_custom_call.1} parent=5 // pred_check
        %p153 = pneg %p152
      $region22: #{tpu_custom_call.1} parent=5 // pred_check_branch
        %155 = sbr.rel (%p153) target = $region24
      $region23: #{tpu_custom_call.1} parent=5 // pred_region
        // Predicated region
        $region25: #{tpu_custom_call.1} parent=23 // pred_check
          %p156 = pneg %p46
        $region26: #{tpu_custom_call.1} parent=23 // pred_check_branch
          %158 = sbr.rel (%p156) target = $region28
        $region27: #{tpu_custom_call.1} parent=23 // pred_region
          %p159 = scmp.lt.s32.totalorder %s20, 1
          %s160 = scalar_select %p159, %s20, 1
          %p161 = scmp.lt.s32.totalorder %s19, 0
          %s162 = scalar_select %p161, %s19, 0
          %s163 = sadd.s32 %s162, %s160
          %s164 = smul.addr %s163, 8
          %s165 = scalar_lea.vmem %s0, %s164
        $region28: #{tpu_custom_call.1} parent=23 // pred_fallthru
          _
      $region24: #{tpu_custom_call.1} parent=5 // pred_fallthru
        _
      %p166 = scmp.le.s32.totalorder 1, %s12
      %p167 = scmp.lt.s32.totalorder %s12, 3
      %p168 = pnand %p166, %p167
      %p169 = pneg %p168
      // Predicated region
      $region29: #{tpu_custom_call.1} parent=5 // pred_check
        _
      $region30: #{tpu_custom_call.1} parent=5 // pred_check_branch
        %171 = sbr.rel (%p168) target = $region32
      $region31: #{tpu_custom_call.1} parent=5 // pred_region
        %s172 = ssub.s32 %s12, 1
        %p173 = scmp.lt.s32.totalorder %s22, 1
        %s174 = scalar_select %p173, %s22, 1
        %p175 = scmp.lt.s32.totalorder %s21, 0
        %s176 = scalar_select %p175, %s21, 0
        %s177 = sadd.s32 %s176, %s174
        %s178 = smul.addr %s177, 8
        %s179 = scalar_lea.vmem %s0, %s178
        %p180 = pneg %p52
        %p181 = pneg %p49
        %p182 = pneg %p73
        %p183 = pneg %p70
        %p184 = scmp.lt.s32.totalorder %s21, 0
        %s185 = scalar_select %p184, %s21, 0
        %s186 = smul.addr %s185, 8
        %s187 = scalar_lea.vmem %s2, %s186
        %p188 = pneg %p99
        %p189 = pneg %p96
        %p190 = pneg %p127
        %p191 = pneg %p124
        %s192 = sand.u32 %s114, 1
        %s193 = scalar_lea.sflag [#allocation3], %s192
        %s194 = sand.u32 %s114, 1
        %s195 = smul.addr %s194, 8
        %s196 = scalar_lea.vmem [#allocation2], %s195
        %p197 = scmp.lt.s32.totalorder %s22, 1
        %s198 = scalar_select %p197, %s22, 1
        %p199 = scmp.lt.s32.totalorder %s21, 0
        %s200 = scalar_select %p199, %s21, 0
        %s201 = sadd.s32 %s200, %s198
        %s202 = smul.addr %s201, 8
        %s203 = scalar_lea.vmem %s0, %s202
        %p204 = scmp.lt.s32.totalorder %s21, 0
        %s205 = scalar_select %p204, %s21, 0
        %s206 = smul.addr %s205, 8
        %s207 = scalar_lea.vmem %s2, %s206
        %v208 = vlaneseq
        %v209 = vand.u32 %v208, 127
        %vm210 = vcmp.ge.s32.totalorder %v209, 32
        %vm211 = vcmp.ge.s32.totalorder %v209, 64
        %vm212 = vcmp.ge.s32.totalorder %v209, 96
        %v213 = vld [vmem:[%s203] sm:$0xff]
        %214 = vset.pattern.permute.xlu0 0
        %215 = vperm.xlu0 %214, %v213
        %v216 = vpop.permute.xlu0 %215
        %217 = vset.pattern.permute.xlu0 1
        %218 = vperm.xlu0 %217, %v213
        %v219 = vpop.permute.xlu0 %218
        %v220 = vsel %vm210, %v219, %v216
        %221 = vset.pattern.permute.xlu0 2
        %222 = vperm.xlu0 %221, %v213
        %v223 = vpop.permute.xlu0 %222
        %v224 = vsel %vm211, %v223, %v220
        %225 = vset.pattern.permute.xlu0 3
        %226 = vperm.xlu0 %225, %v213
        %v227 = vpop.permute.xlu0 %226
        %v228 = vsel %vm212, %v227, %v224
        %v229 = vld [vmem:[%s1] sm:$0x1]
        %v230 = vlaneseq
        %v231 = vshrl.u32 %v230, 7
        %v232 = vsub.s32 0, %v231
        %v233 = vrot.slane %v229, %v232
        %vm234 = vcmp.eq.s32.totalorder %v228, 1
        %v235 = vld [vmem:[%s1 + $0x1] sm:$0x1]
        %v236 = vlaneseq
        %v237 = vshrl.u32 %v236, 7
        %v238 = vsub.s32 0, %v237
        %v239 = vrot.slane %v235, %v238
        %v240 = vsel %vm234, %v239, %v233
        %vm241 = vcmp.eq.s32.totalorder %v228, 2
        %v242 = vld [vmem:[%s1 + $0x2] sm:$0x1]
        %v243 = vlaneseq
        %v244 = vshrl.u32 %v243, 7
        %v245 = vsub.s32 0, %v244
        %v246 = vrot.slane %v242, %v245
        %v247 = vsel %vm241, %v246, %v240
        %vm248 = vcmp.eq.s32.totalorder %v228, 3
        %v249 = vld [vmem:[%s1 + $0x3] sm:$0x1]
        %v250 = vlaneseq
        %v251 = vshrl.u32 %v250, 7
        %v252 = vsub.s32 0, %v251
        %v253 = vrot.slane %v249, %v252
        %v254 = vsel %vm248, %v253, %v247
        %vm255 = vcmp.eq.s32.totalorder %v228, 4
        %v256 = vld [vmem:[%s1 + $0x4] sm:$0x1]
        %v257 = vlaneseq
        %v258 = vshrl.u32 %v257, 7
        %v259 = vsub.s32 0, %v258
        %v260 = vrot.slane %v256, %v259
        %v261 = vsel %vm255, %v260, %v254
        %vm262 = vcmp.eq.s32.totalorder %v228, 5
        %v263 = vld [vmem:[%s1 + $0x5] sm:$0x1]
        %v264 = vlaneseq
        %v265 = vshrl.u32 %v264, 7
        %v266 = vsub.s32 0, %v265
        %v267 = vrot.slane %v263, %v266
        %v268 = vsel %vm262, %v267, %v261
        %vm269 = vcmp.eq.s32.totalorder %v228, 6
        %v270 = vld [vmem:[%s1 + $0x6] sm:$0x1]
        %v271 = vlaneseq
        %v272 = vshrl.u32 %v271, 7
        %v273 = vsub.s32 0, %v272
        %v274 = vrot.slane %v270, %v273
        %v275 = vsel %vm269, %v274, %v268
        %vm276 = vcmp.eq.s32.totalorder %v228, 7
        %v277 = vld [vmem:[%s1 + $0x7] sm:$0x1]
        %v278 = vlaneseq
        %v279 = vshrl.u32 %v278, 7
        %v280 = vsub.s32 0, %v279
        %v281 = vrot.slane %v277, %v280
        %v282 = vsel %vm276, %v281, %v275
        %vm283 = vcmp.eq.s32.totalorder %v228, 8
        %v284 = vld [vmem:[%s1 + $0x8] sm:$0x1]
        %v285 = vlaneseq
        %v286 = vshrl.u32 %v285, 7
        %v287 = vsub.s32 0, %v286
        %v288 = vrot.slane %v284, %v287
        %v289 = vsel %vm283, %v288, %v282
        %v290 = vld [vmem:[%s207] sm:$0xff]
        %v291 = vadd.f32 %v289, %v290
        %292 = vst [vmem:[%s196] sm:$0xff] %v291
        %s293 = sand.u32 %s114, 1
        %s294 = scalar_lea.sflag [#allocation3], %s293
        %s295 = sand.u32 %s114, 1
        %s296 = smul.addr %s295, 8
        %s297 = scalar_lea.vmem [#allocation2], %s296
        // Predicated region
        $region33: #{tpu_custom_call.1} parent=31 // pred_check
          %p298 = pneg %p124
        $region34: #{tpu_custom_call.1} parent=31 // pred_check_branch
          %300 = sbr.rel (%p298) target = $region36
        $region35: #{tpu_custom_call.1} parent=31 // pred_region
          %s302 = ssub.s32 128, 128
          %303 = vsyncadd %s294, %s302
          %s304 = sadd.s32 %s21, %s22
          %s305 = smul.addr %s304, 128
          %s306 = scalar_lea.hbm %s3, %s305
          %s308 = sshll.u32 %s297, 4
          %s309 = int_to_ptr.vmem [resolvable:$true] %s308
          %311 = dma.vmem_to_hbm [thread:$0]  %s309, 128, %s306, %s294
        $region36: #{tpu_custom_call.1} parent=31 // pred_fallthru
          _
      $region32: #{tpu_custom_call.1} parent=5 // pred_fallthru
        _
      %p312 = scmp.le.s32.totalorder 2, %s12
      // Predicated region
      $region37: #{tpu_custom_call.1} parent=5 // pred_check
        %p313 = pneg %p312
      $region38: #{tpu_custom_call.1} parent=5 // pred_check_branch
        %315 = sbr.rel (%p313) target = $region40
      $region39: #{tpu_custom_call.1} parent=5 // pred_region
        %s316 = ssub.s32 %s12, 2
        // Predicated region
        $region41: #{tpu_custom_call.1} parent=39 // pred_check
          %p317 = pneg %p130
        $region42: #{tpu_custom_call.1} parent=39 // pred_check_branch
          %319 = sbr.rel (%p317) target = $region44
        $region43: #{tpu_custom_call.1} parent=39 // pred_region
          %s320 = sand.u32 %s115, 1
          %s321 = scalar_lea.sflag [#allocation3], %s320
          %s322 = sand.u32 %s115, 1
          %s323 = smul.addr %s322, 8
          %s324 = scalar_lea.vmem [#allocation2], %s323
          %325 = dma.done %s321, 128
        $region44: #{tpu_custom_call.1} parent=39 // pred_fallthru
          _
      $region40: #{tpu_custom_call.1} parent=5 // pred_fallthru
        _
    $region6: #{tpu_custom_call.1} parent=1 // loop_footer
      %s16 = sadd.s32 1, %s12
    $region7: #{tpu_custom_call.1} parent=1 // loop_footer_branch
      %11 = sbr.rel target = $region3
    $region8: #{tpu_custom_call.1} parent=1 // loop_exit
      _
    %326 = vsyncpa [#allocation3], 1
    %s327 = scalar_lea.sflag [#allocation3], 1
    %328 = vsyncpa %s327, 1

</llo_original>
